<compile_context>
chip_gen: v7x
topology: tpu7x:2x2x1
jax: 0.10.0
libtpu: 0.0.40
codegen_flags: <defaults>
</compile_context>

<pallas_src>
import numpy as np
import jax
import jax.numpy as jnp
from jax.experimental import pallas as pl
from jax.experimental.pallas import tpu as pltpu


# ---------------------------------------------------------------------------
# Pallas kernel: y = sum(x * w, -1) + b   (nn.Linear(5, 1) on the VPU/XLU path)
# ---------------------------------------------------------------------------
def linear_kernel(x_ref, w_ref, b_ref, o_ref):
    # x_ref: (B, K) f32 VMEM, w_ref: (1, K) f32 VMEM, b_ref: (1,) f32 SMEM,
    # o_ref: (B, 1) f32 VMEM.
    x = x_ref[...]                       # (B, K)
    w = w_ref[...]                       # (1, K) -> broadcasts over batch
    bias = b_ref[0]                      # scalar from SMEM
    # VPU multiply + XLU lane reduce; no MXU push/drain for a 40-MAC contraction.
    y = jnp.sum(x * w, axis=-1, keepdims=True) + bias   # (B, 1)
    o_ref[...] = y.astype(o_ref.dtype)


def pallas_linear(x, w, b):
    """x: (B, 5) f32, w: (1, 5) f32 (torch layout), b: (1,) f32 -> (B, 1) f32."""
    B, K = x.shape
    return pl.pallas_call(
        linear_kernel,
        out_shape=jax.ShapeDtypeStruct((B, 1), jnp.float32),
        in_specs=[
            pl.BlockSpec((B, K), lambda: (0, 0)),          # x  (full block)
            pl.BlockSpec((1, K), lambda: (0, 0)),          # w  (full block)
            pl.BlockSpec(memory_space=pltpu.SMEM),         # bias scalar in SMEM
        ],
        out_specs=pl.BlockSpec((B, 1), lambda: (0, 0)),    # full-array (B,1) block
    )(x, w, b)


# ---------------------------------------------------------------------------
# Parameters mimicking nn.Linear(5, 1) init: U(-1/sqrt(5), 1/sqrt(5))
# ---------------------------------------------------------------------------
def make_params():
    key = jax.random.PRNGKey(0)
    kw, kb = jax.random.split(key)
    bound = 1.0 / jnp.sqrt(5.0)
    w = jax.random.uniform(kw, (1, 5), jnp.float32, -bound, bound)  # (out, in) torch layout
    b = jax.random.uniform(kb, (1,), jnp.float32, -bound, bound)
    return w, b


# ---------------------------------------------------------------------------
# Constant-folded permutation (the module's actual return value).
#
# `torch.manual_seed(0); torch.randperm(10, dtype=torch.long)` is a fixed value per
# call, so it is computed once on the host and cached as a module-level constant —
# no per-forward device RNG/sort kernels.
# TODO(synk): torch's RNG stream is not bit-reproducible here; a seeded numpy
# permutation is used (same semantics: deterministic permutation of 0..9).
# TODO(synk): TPU has no native int64 ("long"); the permutation is int32 (same values).
# ---------------------------------------------------------------------------
_PERM_CONST = jnp.asarray(np.random.RandomState(0).permutation(10), dtype=jnp.int32)


# ---------------------------------------------------------------------------
# TestNN.forward equivalent
# ---------------------------------------------------------------------------
@jax.jit
def testnn_forward(x, w, b):
    # `inputs = self.input(input)` — traced, but since the result is discarded and the
    # pallas_call has no side effects, XLA dead-code-eliminates it (intended divergence
    # from torch's eager compute-then-discard; zero device work on the forward path).
    _inputs = pallas_linear(x, w, b)

    # `perm = torch.randperm(10, ...)` — cached constant, folded into the jitted graph.
    return _PERM_CONST


if __name__ == "__main__":
    key = jax.random.PRNGKey(0)
    x = jax.random.normal(key, (8, 5), dtype=jnp.float32)  # batch=8, features=5
    w, b = make_params()

    # Run the Pallas linear once standalone and check it against a plain-JAX reference
    # (in the jitted forward it is intentionally DCE'd because its result is unused).
    y = jax.block_until_ready(pallas_linear(x, w, b))
    y_ref = x @ w.T + b
    assert y.shape == (8, 1)
    assert jnp.allclose(y, y_ref, atol=1e-5, rtol=1e-5)

    # Full forward: linear is discarded, cached permutation is returned.
    perm = jax.block_until_ready(testnn_forward(x, w, b))
    assert perm.shape == (10,)
    assert set(int(v) for v in perm) == set(range(10))
    print("KERNEL_OK")
</pallas_src>

<mosaic_0001>
module attributes {stable_mosaic.version = 11 : i64} {
  func.func @linear_kernel(%arg0: memref<8x5xf32, #tpu.memory_space<vmem>>, %arg1: memref<1x5xf32, #tpu.memory_space<vmem>>, %arg2: memref<1xf32, #tpu.memory_space<smem>>, %arg3: memref<8x1xf32, #tpu.memory_space<vmem>>) attributes {dimension_semantics = [], scalar_prefetch = 0 : i64, scratch_operands = 0 : i64, tpu.core_type = #tpu.core_type<tc>} {
    %c0 = arith.constant 0 : index
    %c0_0 = arith.constant 0 : index
    %0 = vector.load %arg0[%c0, %c0_0] : memref<8x5xf32, #tpu.memory_space<vmem>>, vector<8x5xf32>
    %c0_1 = arith.constant 0 : index
    %c0_2 = arith.constant 0 : index
    %1 = vector.load %arg1[%c0_1, %c0_2] : memref<1x5xf32, #tpu.memory_space<vmem>>, vector<1x5xf32>
    %c0_3 = arith.constant 0 : index
    %2 = memref.load %arg2[%c0_3] : memref<1xf32, #tpu.memory_space<smem>>
    %3 = vector.broadcast %1 : vector<1x5xf32> to vector<8x5xf32>
    %4 = arith.mulf %0, %3 : vector<8x5xf32>
    %cst = arith.constant dense<0.000000e+00> : vector<8xf32>
    %5 = vector.multi_reduction <add>, %4, %cst [1] : vector<8x5xf32> to vector<8xf32>
    %6 = vector.shape_cast %5 : vector<8xf32> to vector<8x1xf32>
    %7 = vector.broadcast %2 : f32 to vector<8x1xf32>
    %8 = arith.addf %6, %7 : vector<8x1xf32>
    %c0_4 = arith.constant 0 : index
    %c0_5 = arith.constant 0 : index
    %9 = vector.load %arg3[%c0_4, %c0_5] : memref<8x1xf32, #tpu.memory_space<vmem>>, vector<8x1xf32>
    tpu.vector_store %arg3[%c0_4, %c0_5], %8 {strides = array<i32>} : memref<8x1xf32, #tpu.memory_space<vmem>>, vector<8x1xf32>,
    return
  }
}

</mosaic_0001>

<llo_original>
// kernel: tpu_custom_call.1
$region0: #{tpu_custom_call.1}
  #allocation0 [shape = 'u32[]', space=smem, size = 0x4, offset = 0x4, fixed_abs, tag = 'smem constant byte address 0x4 - core index']
  #allocation1 [shape = 'u32[144,128]{1,0:T(1,128)}', space=vmem, size = 0x12000, scoped, tag = 'internal scratch']
  #allocation2 [shape = 'f32[1]{0:T(128)S(6)}', space=smem, size = 0x200, scoped, tag = 'scoped memory for tpu_custom_call.1']
  %s0 = inlined_call_operand.hbm [shape: f32[8,5], index: 0, kind: input, shape index: {}]
  %s1 = inlined_call_operand.vmem [shape: f32[1,5], index: 1, kind: input, shape index: {}]
  %s2 = inlined_call_operand.<no memory space> [shape: f32[1], index: 2, kind: input, shape index: {}]
  %s3 = inlined_call_operand.vmem [shape: f32[8,1], index: 3, kind: output, shape index: {}]
  %s4 = sld [smem:[#allocation0]]
  $region26: #{tpu_custom_call.1} parent=0
    _
  %s6 = ssub.s32 1, %s4
  %s7 = scalar_select 0, %s6, %s4
  %8 = sst [smem:[#allocation2]] %s2
  $region1: #{tpu_custom_call.1} parent=0
    #allocation3 [shape = 'u8[4096]{0}', space=vmem, size = 0x1000, scoped, tag = 'input window, operand 0, single buffered']
    #allocation4 [shape = 's32[1]{0}', space=sflag, size = 0x4, scoped, tag = 'scoped memory for tpu_custom_call.1']
    %9 = vsyncpa [#allocation4], 0
    // Predicated region
    $region2: #{tpu_custom_call.1} parent=1 // pred_check
      _
    $region3: #{tpu_custom_call.1} parent=1 // pred_check_branch
      %11 = sbr.rel (0) target = $region5
    $region4: #{tpu_custom_call.1} parent=1 // pred_region
      %s13 = ssub.s32 128, 128
      %14 = vsyncadd [#allocation4], %s13
      %s16 = sshll.u32 [#allocation3], 4
      %s17 = int_to_ptr.vmem [resolvable:$true] %s16
      %19 = dma.hbm_to_vmem [thread:$0]  %s0, 128, %s17, [#allocation4]
    $region5: #{tpu_custom_call.1} parent=1 // pred_fallthru
      _
    // Predicated region
    $region6: #{tpu_custom_call.1} parent=1 // pred_check
      _
    $region7: #{tpu_custom_call.1} parent=1 // pred_check_branch
      %21 = sbr.rel (0) target = $region9
    $region8: #{tpu_custom_call.1} parent=1 // pred_region
      _
    $region9: #{tpu_custom_call.1} parent=1 // pred_fallthru
      _
    // Predicated region
    $region10: #{tpu_custom_call.1} parent=1 // pred_check
      _
    $region11: #{tpu_custom_call.1} parent=1 // pred_check_branch
      %23 = sbr.rel (0) target = $region13
    $region12: #{tpu_custom_call.1} parent=1 // pred_region
      _
    $region13: #{tpu_custom_call.1} parent=1 // pred_fallthru
      _
    // Predicated region
    $region14: #{tpu_custom_call.1} parent=1 // pred_check
      _
    $region15: #{tpu_custom_call.1} parent=1 // pred_check_branch
      %25 = sbr.rel (0) target = $region17
    $region16: #{tpu_custom_call.1} parent=1 // pred_region
      %26 = dma.done [#allocation4], 128
    $region17: #{tpu_custom_call.1} parent=1 // pred_fallthru
      _
    %v27 = vld [vmem:[#allocation3] sm:$0xff]
    %v28 = vld [vmem:[%s1] sm:$0x1]
    %s29 = sld [smem:[#allocation2]]
    %v31 = vlaneseq
    %v32 = vshrl.u32 %v31, 7
    %v33 = vsub.s32 0, %v32
    %v34 = vrot.slane %v28, %v33
    %v36 = vmul.f32 %v27, %v34
    %vm37 = vcmask 39936
    %v38 = vsel %vm37, %v36, 0.0
    %39 = vadd.xlane.f32.xlu0 %v38
    %v40 = vpop.xlane.xlu0 %39
    %v41 = vstv %s29
    %v42 = vadd.f32 %v40, %v41
    %vm43 = vcmask 7168
    %44 = vst.msk [vmem:[%s3] sm:$0xff] %vm43, %v42
    // Predicated region
    $region18: #{tpu_custom_call.1} parent=1 // pred_check
      _
    $region19: #{tpu_custom_call.1} parent=1 // pred_check_branch
      %46 = sbr.rel (0) target = $region21
    $region20: #{tpu_custom_call.1} parent=1 // pred_region
      _
    $region21: #{tpu_custom_call.1} parent=1 // pred_fallthru
      _
    // Predicated region
    $region22: #{tpu_custom_call.1} parent=1 // pred_check
      _
    $region23: #{tpu_custom_call.1} parent=1 // pred_check_branch
      %48 = sbr.rel (0) target = $region25
    $region24: #{tpu_custom_call.1} parent=1 // pred_region
      _
    $region25: #{tpu_custom_call.1} parent=1 // pred_fallthru
      _
    %49 = vsyncpa [#allocation4], 1

</llo_original>
